<compile_context>
chip_gen: v7x
topology: tpu7x:2x2x1
jax: 0.10.0
libtpu: 0.0.40
codegen_flags: <defaults>
</compile_context>

<pallas_src>
import math

import jax
import jax.numpy as jnp
from jax.experimental import pallas as pl
from jax.experimental.pallas import tpu as pltpu


def _copy_kernel(x_ref, o_ref):
    # Straight copy: identical (rows, lanes) block shapes on both sides.
    o_ref[...] = x_ref[...]


# ~4 MiB per block: input + output, each double-buffered => ~16 MiB resident.
_TARGET_BLOCK_BYTES = 4 * 1024 * 1024
# Above v5e's 16 MiB scoped default, well under v7x's 64 MiB physical VMEM.
_VMEM_LIMIT_BYTES = 32 * 1024 * 1024


def _sublane_multiple(itemsize: int) -> int:
    """Rows per packed vreg sublane group: 8 (32-bit), 16 (bf16/f16), 32 (int8/fp8)."""
    return 8 * max(1, 4 // itemsize)


def _choose_view(bt: int, feat: int) -> tuple[int, int]:
    """Pick a lane-dense 2-D (rows, lanes) view of the flat (bt*feat) data."""
    total = bt * feat
    if feat >= 128 and feat % 128 == 0:
        return bt, feat                       # already lane-dense
    if total % 128 == 0:
        for lane in (1024, 512, 256, 128):    # prefer wide, unmasked stores
            if total % lane == 0:
                return total // lane, lane
    # Fallback: lane-sparse (feat < 128 and total not a multiple of 128).
    # Only hit for tiny/odd shapes; stores are masked but the array is small.
    return bt, feat


def _choose_blocks(rows: int, lanes: int, itemsize: int, s_mult: int) -> tuple[int, int]:
    """Block shape (rows_block, lane_block) bounded by ~_TARGET_BLOCK_BYTES."""
    row_bytes = lanes * itemsize
    if row_bytes * s_mult <= _TARGET_BLOCK_BYTES:
        # Full lane width; tile rows only.
        lane_block = lanes
        rows_target = _TARGET_BLOCK_BYTES // max(1, row_bytes)
        if rows_target >= rows:
            rows_block = rows                 # whole array in one block (legal)
        else:
            rows_block = max(s_mult, (rows_target // s_mult) * s_mult)
    else:
        # Very wide rows: also tile the lane axis (multiple of 128) so even the
        # minimum-height block stays within the VMEM budget.
        rows_block = min(rows, s_mult)
        lane_block = (_TARGET_BLOCK_BYTES // (rows_block * itemsize)) // 128 * 128
        lane_block = max(128, min(lane_block, lanes))
    return rows_block, lane_block


def unflatten_time(x: jax.Array, batch_size: int, *, donate_input: bool = False) -> jax.Array:
    """Pallas implementation of sinabs UnflattenTime.forward."""
    bt = x.shape[0]
    assert bt % batch_size == 0, "leading dim must be divisible by batch_size"
    num_time_steps = bt // batch_size
    rest = x.shape[1:]
    feat = int(math.prod(rest)) if rest else 1
    total = bt * feat

    itemsize = jnp.dtype(x.dtype).itemsize
    s_mult = _sublane_multiple(itemsize)

    rows, lanes = _choose_view(bt, feat)
    x2 = x.reshape(rows, lanes)               # layout plumbing outside the kernel

    rows_block, lane_block = _choose_blocks(rows, lanes, itemsize, s_mult)
    grid = (pl.cdiv(rows, rows_block), pl.cdiv(lanes, lane_block))

    out2 = pl.pallas_call(
        _copy_kernel,
        out_shape=jax.ShapeDtypeStruct((rows, lanes), x.dtype),
        grid_spec=pltpu.PrefetchScalarGridSpec(
            num_scalar_prefetch=0,
            grid=grid,
            in_specs=[pl.BlockSpec((rows_block, lane_block), lambda i, j: (i, j))],
            out_specs=pl.BlockSpec((rows_block, lane_block), lambda i, j: (i, j)),
        ),
        compiler_params=pltpu.CompilerParams(
            # Both axes independent -> v7x shards chunks across its 2 TensorCores;
            # no-op on single-TC v5e/v6e.
            dimension_semantics=("parallel", "parallel"),
            vmem_limit_bytes=_VMEM_LIMIT_BYTES,
        ),
        # Purely memory-bound: 1x read + 1x write of the whole array.
        cost_estimate=pl.CostEstimate(
            flops=0, transcendentals=0, bytes_accessed=2 * total * itemsize),
        # When the op is standalone, donate the input buffer to drop the extra
        # HBM output allocation (only enable if the caller no longer needs x).
        input_output_aliases=({0: 0} if donate_input else {}),
    )(x2)

    # Free reshape of the leading axis + restore trailing dims outside the call.
    return out2.reshape((batch_size, num_time_steps) + rest)


if __name__ == "__main__":
    key = jax.random.PRNGKey(0)
    batch_size = 2
    time_steps = 4
    C, H, W = 4, 16, 16

    k1, k2, k3 = jax.random.split(key, 3)

    # 4-D f32: (B*T, C, H, W) -> (B, T, C, H, W). feat = 1024 -> direct lane-dense path.
    x4 = jax.random.normal(k1, (batch_size * time_steps, C, H, W), dtype=jnp.float32)
    y4 = jax.block_until_ready(unflatten_time(x4, batch_size))
    ref4 = x4.reshape(batch_size, time_steps, C, H, W)
    assert y4.shape == (batch_size, time_steps, C, H, W)
    assert y4.dtype == x4.dtype
    assert jnp.array_equal(y4, ref4)

    # 2-D f32, feat=4 and total=32 (not a multiple of 128): tiny fallback path.
    x2 = jax.random.normal(k2, (batch_size * time_steps, C), dtype=jnp.float32)
    y2 = jax.block_until_ready(unflatten_time(x2, batch_size))
    ref2 = x2.reshape(batch_size, time_steps, C)
    assert y2.shape == (batch_size, time_steps, C)
    assert jnp.array_equal(y2, ref2)

    # 2-D bf16, feat=32 < 128 but total % 128 == 0: repacked lane-dense path with
    # dtype-aware (16-row) sublane rounding.
    x2b = jax.random.normal(k3, (batch_size * 8, 32), dtype=jnp.bfloat16)
    y2b = jax.block_until_ready(unflatten_time(x2b, batch_size))
    ref2b = x2b.reshape(batch_size, 8, 32)
    assert y2b.shape == (batch_size, 8, 32)
    assert y2b.dtype == x2b.dtype
    assert jnp.array_equal(y2b, ref2b)

    print("KERNEL_OK")
</pallas_src>

<mosaic_0001>
module attributes {stable_mosaic.version = 11 : i64} {
  func.func @_copy_kernel(%arg0: i32, %arg1: i32, %arg2: memref<8x1024xf32, #tpu.memory_space<vmem>>, %arg3: memref<8x1024xf32, #tpu.memory_space<vmem>>) attributes {dimension_semantics = [#tpu.dimension_semantics<parallel>, #tpu.dimension_semantics<parallel>], iteration_bounds = array<i64: 1, 1>, scalar_prefetch = 0 : i64, scratch_operands = 0 : i64, tpu.core_type = #tpu.core_type<tc>, window_params = [{transform_indices = @transform_0, window_bounds = array<i64: 8, 1024>}, {transform_indices = @transform_1, window_bounds = array<i64: 8, 1024>}]} {
    %c0 = arith.constant 0 : index
    %c0_0 = arith.constant 0 : index
    %0 = vector.load %arg2[%c0, %c0_0] : memref<8x1024xf32, #tpu.memory_space<vmem>>, vector<8x1024xf32>
    %c0_1 = arith.constant 0 : index
    %c0_2 = arith.constant 0 : index
    %1 = vector.load %arg3[%c0_1, %c0_2] : memref<8x1024xf32, #tpu.memory_space<vmem>>, vector<8x1024xf32>
    tpu.vector_store %arg3[%c0_1, %c0_2], %0 {strides = array<i32>} : memref<8x1024xf32, #tpu.memory_space<vmem>>, vector<8x1024xf32>,
    return
  }
  func.func @transform_0(%arg0: i32, %arg1: i32) -> (i32, i32) {
    %c0_i32 = arith.constant 0 : i32
    return %arg0, %arg1 : i32, i32
  }
  func.func @transform_1(%arg0: i32, %arg1: i32) -> (i32, i32) {
    %c0_i32 = arith.constant 0 : i32
    return %arg0, %arg1 : i32, i32
  }
}

</mosaic_0001>

<llo_original>
// kernel: tpu_custom_call.1
$region0: #{tpu_custom_call.1}
  #allocation0 [shape = 'u32[]', space=smem, size = 0x4, offset = 0x4, fixed_abs, tag = 'smem constant byte address 0x4 - core index']
  #allocation1 [shape = 'u32[144,128]{1,0:T(1,128)}', space=vmem, size = 0x12000, scoped, tag = 'internal scratch']
  %s0 = inlined_call_operand.hbm [shape: f32[8,1024], index: 0, kind: input, shape index: {}]
  %s1 = inlined_call_operand.hbm [shape: f32[8,1024], index: 1, kind: output, shape index: {}]
  %s2 = sld [smem:[#allocation0]]
  $region18: #{tpu_custom_call.1} parent=0
    _
  %s4 = ssub.s32 1, %s2
  %s5 = scalar_select 0, %s4, %s2
  $region1: #{tpu_custom_call.1} parent=0
    #allocation2 [shape = 'u8[32768]{0}', space=vmem, size = 0x8000, scoped, tag = 'input window, operand 0, single buffered']
    #allocation3 [shape = 's32[1]{0}', space=sflag, size = 0x4, scoped, tag = 'scoped memory for tpu_custom_call.1']
    #allocation4 [shape = 's32[1]{0}', space=sflag, size = 0x4, scoped, tag = 'scoped memory for tpu_custom_call.1']
    #allocation5 [shape = 'u8[32768]{0}', space=vmem, size = 0x8000, scoped, tag = 'output window, operand 0, single buffered']
    %6 = vsyncpa [#allocation3], 0
    %7 = vsyncpa [#allocation4], 0
    // Predicated region
    $region2: #{tpu_custom_call.1} parent=1 // pred_check
      _
    $region3: #{tpu_custom_call.1} parent=1 // pred_check_branch
      %9 = sbr.rel (0) target = $region5
    $region4: #{tpu_custom_call.1} parent=1 // pred_region
      %s11 = ssub.s32 1024, 1024
      %12 = vsyncadd [#allocation3], %s11
      %s14 = sshll.u32 [#allocation2], 4
      %s15 = int_to_ptr.vmem [resolvable:$true] %s14
      %17 = dma.hbm_to_vmem [thread:$0]  %s0, 1024, %s15, [#allocation3]
    $region5: #{tpu_custom_call.1} parent=1 // pred_fallthru
      _
    // Predicated region
    $region6: #{tpu_custom_call.1} parent=1 // pred_check
      _
    $region7: #{tpu_custom_call.1} parent=1 // pred_check_branch
      %19 = sbr.rel (0) target = $region9
    $region8: #{tpu_custom_call.1} parent=1 // pred_region
      %20 = dma.done [#allocation3], 1024
    $region9: #{tpu_custom_call.1} parent=1 // pred_fallthru
      _
    %v21 = vld [vmem:[#allocation2] sm:$0xff]
    %v22 = vld [vmem:[#allocation2 + $0x8] sm:$0xff]
    %v23 = vld [vmem:[#allocation2 + $0x10] sm:$0xff]
    %v24 = vld [vmem:[#allocation2 + $0x18] sm:$0xff]
    %v25 = vld [vmem:[#allocation2 + $0x20] sm:$0xff]
    %v26 = vld [vmem:[#allocation2 + $0x28] sm:$0xff]
    %v27 = vld [vmem:[#allocation2 + $0x30] sm:$0xff]
    %v28 = vld [vmem:[#allocation2 + $0x38] sm:$0xff]
    %29 = vst [vmem:[#allocation5] sm:$0xff] %v21
    %30 = vst [vmem:[#allocation5 + $0x8] sm:$0xff] %v22
    %31 = vst [vmem:[#allocation5 + $0x10] sm:$0xff] %v23
    %32 = vst [vmem:[#allocation5 + $0x18] sm:$0xff] %v24
    %33 = vst [vmem:[#allocation5 + $0x20] sm:$0xff] %v25
    %34 = vst [vmem:[#allocation5 + $0x28] sm:$0xff] %v26
    %35 = vst [vmem:[#allocation5 + $0x30] sm:$0xff] %v27
    %36 = vst [vmem:[#allocation5 + $0x38] sm:$0xff] %v28
    // Predicated region
    $region10: #{tpu_custom_call.1} parent=1 // pred_check
      _
    $region11: #{tpu_custom_call.1} parent=1 // pred_check_branch
      %38 = sbr.rel (0) target = $region13
    $region12: #{tpu_custom_call.1} parent=1 // pred_region
      %s40 = ssub.s32 1024, 1024
      %41 = vsyncadd [#allocation4], %s40
      %s43 = sshll.u32 [#allocation5], 4
      %s44 = int_to_ptr.vmem [resolvable:$true] %s43
      %46 = dma.vmem_to_hbm [thread:$0]  %s44, 1024, %s1, [#allocation4]
    $region13: #{tpu_custom_call.1} parent=1 // pred_fallthru
      _
    // Predicated region
    $region14: #{tpu_custom_call.1} parent=1 // pred_check
      _
    $region15: #{tpu_custom_call.1} parent=1 // pred_check_branch
      %48 = sbr.rel (0) target = $region17
    $region16: #{tpu_custom_call.1} parent=1 // pred_region
      %49 = dma.done [#allocation4], 1024
    $region17: #{tpu_custom_call.1} parent=1 // pred_fallthru
      _
    %50 = vsyncpa [#allocation3], 1
    %51 = vsyncpa [#allocation4], 1

</llo_original>
